<compile_context>
chip_gen: v7x
topology: tpu7x:2x2x1
jax: 0.10.0
libtpu: 0.0.40
codegen_flags: <defaults>
</compile_context>

<pallas_src>
import jax
import jax.numpy as jnp
from jax.experimental import pallas as pl
from jax.experimental.pallas import tpu as pltpu


def head_width(num_actions):
    """Fused head rows: K action logits + 1 value, rounded up to 8 sublanes."""
    return max(8, pl.cdiv(num_actions + 1, 8) * 8)


def make_policy_kernel(num_actions):
    """Kernel closure over the static number of discrete actions."""
    value_row = num_actions  # critic value lives in the row right after logits

    def policy_kernel(xt_ref, w1t_ref, b1t_ref, w2t_ref, b2t_ref,
                      wht_ref, bht_ref, out_ref):
        x = xt_ref[...]                                              # [obs, TN]

        # actor_latent: Linear -> Tanh -> Linear -> Tanh  (features in sublanes)
        h1 = jnp.tanh(jnp.dot(w1t_ref[...], x,
                              preferred_element_type=jnp.float32) + b1t_ref[...])
        h2 = jnp.tanh(jnp.dot(w2t_ref[...], h1,
                              preferred_element_type=jnp.float32) + b2t_ref[...])

        # fused actor+critic head: [HEAD_W, TN]
        head = jnp.dot(wht_ref[...], h2,
                       preferred_element_type=jnp.float32) + bht_ref[...]

        row = jax.lax.broadcasted_iota(jnp.int32, head.shape, 0)
        is_action = row < num_actions

        # numerically-stable softmax over the K action rows (sublane reduce)
        logits = jnp.where(is_action, head, -jnp.inf)
        m = jnp.max(logits, axis=0, keepdims=True)                   # [1, TN]
        e = jnp.exp(logits - m)                    # padded rows -> exp(-inf)=0
        inv = pl.reciprocal(jnp.sum(e, axis=0, keepdims=True), approx=False)
        probs = e * inv

        # rows [0:K) = probs, row K = raw critic value, remaining rows = 0
        out_ref[...] = jnp.where(row == value_row, head, probs)

    return policy_kernel


def policy_forward(state, params, *, num_actions, tile_n=2048):
    """state: [N, obs_dim] f32. Returns (probs [N, K], value [N])."""
    N, obs = state.shape
    hid = params["w1t"].shape[0]
    head_w = params["wht"].shape[0]

    # Batch lives in lanes -> batch tiles must be multiples of 128.
    tile_n = max(128, (int(tile_n) // 128) * 128)
    n128 = pl.cdiv(N, 128) * 128
    if n128 >= 256:
        # keep >= 2 grid steps so ("parallel",) can shard the batch across the
        # two TensorCores on v7x (no-op on single-TC v5e/v6e)
        tile_n = min(tile_n, max(128, (n128 // 2) // 128 * 128))
    else:
        tile_n = 128
    n_pad = pl.cdiv(N, tile_n) * tile_n
    grid = (n_pad // tile_n,)

    # Batch-in-lanes layout needs one transpose of state anyway; the zero pad
    # of the ragged batch tail fuses into that same XLA copy.
    xt = jnp.transpose(state)                                        # [obs, N]
    if n_pad != N:
        xt = jnp.pad(xt, ((0, 0), (0, n_pad - N)))

    cost = pl.CostEstimate(
        flops=2 * n_pad * (obs * hid + hid * hid + hid * head_w),
        transcendentals=n_pad * (2 * hid + head_w),
        bytes_accessed=4 * (n_pad * (obs + head_w)
                            + obs * hid + hid * hid + head_w * hid
                            + 2 * hid + head_w),
    )

    out = pl.pallas_call(
        make_policy_kernel(num_actions),
        out_shape=jax.ShapeDtypeStruct((head_w, n_pad), jnp.float32),
        grid_spec=pltpu.PrefetchScalarGridSpec(
            num_scalar_prefetch=0,
            grid=grid,
            in_specs=[
                pl.BlockSpec((obs, tile_n), lambda i: (0, i)),     # x^T (streamed)
                pl.BlockSpec((hid, obs), lambda i: (0, 0)),        # w1^T (resident)
                pl.BlockSpec((hid, 1), lambda i: (0, 0)),          # b1^T
                pl.BlockSpec((hid, hid), lambda i: (0, 0)),        # w2^T
                pl.BlockSpec((hid, 1), lambda i: (0, 0)),          # b2^T
                pl.BlockSpec((head_w, hid), lambda i: (0, 0)),     # fused head W^T
                pl.BlockSpec((head_w, 1), lambda i: (0, 0)),       # fused head b^T
            ],
            out_specs=pl.BlockSpec((head_w, tile_n), lambda i: (0, i)),
        ),
        compiler_params=pltpu.CompilerParams(
            dimension_semantics=("parallel",)),
        cost_estimate=cost,
    )(xt,
      params["w1t"], params["b1t"],
      params["w2t"], params["b2t"],
      params["wht"], params["bht"])

    probs = out[:num_actions, :N].T                                  # [N, K]
    value = out[num_actions, :N]                                     # [N]
    return probs, value


def init_params(key, obs_dim, num_hidden, num_actions):
    """Deterministic init mimicking nn.Linear default (uniform +-1/sqrt(fan_in)).
    Raw weights are stored [in, out] (for the pure-JAX reference); the kernel
    uses transposed copies plus a fused actor+critic head padded to 8 rows."""
    def linear(k, fan_in, fan_out):
        kw, kb = jax.random.split(k)
        bound = 1.0 / jnp.sqrt(fan_in)
        w = jax.random.uniform(kw, (fan_in, fan_out), jnp.float32, -bound, bound)
        b = jax.random.uniform(kb, (1, fan_out), jnp.float32, -bound, bound)
        return w, b

    k1, k2, k3, k4 = jax.random.split(key, 4)
    w1, b1 = linear(k1, obs_dim, num_hidden)
    w2, b2 = linear(k2, num_hidden, num_hidden)
    wa, ba = linear(k3, num_hidden, num_actions)
    wc, bc = linear(k4, num_hidden, 1)

    head_w = head_width(num_actions)
    wht = (jnp.zeros((head_w, num_hidden), jnp.float32)
           .at[:num_actions, :].set(wa.T)
           .at[num_actions, :].set(wc[:, 0]))
    bht = (jnp.zeros((head_w, 1), jnp.float32)
           .at[:num_actions, 0].set(ba[0])
           .at[num_actions, 0].set(bc[0, 0]))

    return dict(w1=w1, b1=b1, w2=w2, b2=b2,
                wa=wa, ba=ba, wc=wc, bc=bc,
                w1t=w1.T, b1t=b1.T, w2t=w2.T, b2t=b2.T,
                wht=wht, bht=bht)


def policy_forward_ref(state, p):
    """Pure-JAX reference of the PyTorch forward pass."""
    h1 = jnp.tanh(state @ p["w1"] + p["b1"])
    h2 = jnp.tanh(h1 @ p["w2"] + p["b2"])
    logits = h2 @ p["wa"] + p["ba"]
    probs = jax.nn.softmax(logits, axis=-1)
    value = (h2 @ p["wc"] + p["bc"])[:, 0]
    return probs, value


if __name__ == "__main__":
    # Shapes consistent with the module: obs_dim=8 (LunarLander), num_hidden=16
    # (module default), K=4 discrete actions.
    OBS, HID, K = 8, 16, 4

    key = jax.random.PRNGKey(0)
    k_params, k_state, k_state2 = jax.random.split(key, 3)
    params = init_params(k_params, OBS, HID, K)

    # --- small batch (single grid step) ---
    N = 8
    state = jax.random.normal(k_state, (N, OBS), dtype=jnp.float32)
    fwd = jax.jit(lambda s, p: policy_forward(s, p, num_actions=K))
    probs, value = fwd(state, params)
    jax.block_until_ready((probs, value))

    probs_ref, value_ref = policy_forward_ref(state, params)
    assert probs.shape == (N, K) and value.shape == (N,)
    assert jnp.allclose(probs, probs_ref, atol=1e-5, rtol=1e-5)
    assert jnp.allclose(value, value_ref, atol=1e-5, rtol=1e-5)
    assert jnp.allclose(jnp.sum(probs, axis=-1), 1.0, atol=1e-5)

    # --- larger batch exercising the grid / padding / megacore-split path ---
    N2 = 200
    state2 = jax.random.normal(k_state2, (N2, OBS), dtype=jnp.float32)
    fwd2 = jax.jit(lambda s, p: policy_forward(s, p, num_actions=K, tile_n=2048))
    probs2, value2 = fwd2(state2, params)
    jax.block_until_ready((probs2, value2))

    probs2_ref, value2_ref = policy_forward_ref(state2, params)
    assert probs2.shape == (N2, K) and value2.shape == (N2,)
    assert jnp.allclose(probs2, probs2_ref, atol=1e-5, rtol=1e-5)
    assert jnp.allclose(value2, value2_ref, atol=1e-5, rtol=1e-5)
    assert jnp.allclose(jnp.sum(probs2, axis=-1), 1.0, atol=1e-5)

    print("KERNEL_OK")
</pallas_src>

<mosaic_0001>
module attributes {stable_mosaic.version = 11 : i64} {
  func.func @policy_kernel(%arg0: i32, %arg1: memref<8x128xf32, #tpu.memory_space<vmem>>, %arg2: memref<16x8xf32, #tpu.memory_space<vmem>>, %arg3: memref<16x1xf32, #tpu.memory_space<vmem>>, %arg4: memref<16x16xf32, #tpu.memory_space<vmem>>, %arg5: memref<16x1xf32, #tpu.memory_space<vmem>>, %arg6: memref<8x16xf32, #tpu.memory_space<vmem>>, %arg7: memref<8x1xf32, #tpu.memory_space<vmem>>, %arg8: memref<8x128xf32, #tpu.memory_space<vmem>>) attributes {dimension_semantics = [#tpu.dimension_semantics<parallel>], iteration_bounds = array<i64: 1>, scalar_prefetch = 0 : i64, scratch_operands = 0 : i64, tpu.core_type = #tpu.core_type<tc>, window_params = [{transform_indices = @transform_0, window_bounds = array<i64: 8, 128>}, {pipeline_mode = #tpu.pipeline_mode<synchronous>, transform_indices = @transform_1, window_bounds = array<i64: 16, 8>}, {pipeline_mode = #tpu.pipeline_mode<synchronous>, transform_indices = @transform_2, window_bounds = array<i64: 16, 1>}, {pipeline_mode = #tpu.pipeline_mode<synchronous>, transform_indices = @transform_3, window_bounds = array<i64: 16, 16>}, {pipeline_mode = #tpu.pipeline_mode<synchronous>, transform_indices = @transform_4, window_bounds = array<i64: 16, 1>}, {pipeline_mode = #tpu.pipeline_mode<synchronous>, transform_indices = @transform_5, window_bounds = array<i64: 8, 16>}, {pipeline_mode = #tpu.pipeline_mode<synchronous>, transform_indices = @transform_6, window_bounds = array<i64: 8, 1>}, {transform_indices = @transform_7, window_bounds = array<i64: 8, 128>}]} {
    %c0 = arith.constant 0 : index
    %c0_0 = arith.constant 0 : index
    %0 = vector.load %arg1[%c0, %c0_0] : memref<8x128xf32, #tpu.memory_space<vmem>>, vector<8x128xf32>
    %c0_1 = arith.constant 0 : index
    %c0_2 = arith.constant 0 : index
    %1 = vector.load %arg2[%c0_1, %c0_2] : memref<16x8xf32, #tpu.memory_space<vmem>>, vector<16x8xf32>
    %cst = arith.constant dense<0.000000e+00> : vector<16x128xf32>
    %2 = tpu.matmul %1, %0, %cst {dimension_numbers = #tpu.dot_dimension_numbers<[1], [0], [0], [1], [0, 0, 1, 1], [], []>} : vector<16x8xf32>, vector<8x128xf32>, vector<16x128xf32> -> vector<16x128xf32>
    %c0_3 = arith.constant 0 : index
    %c0_4 = arith.constant 0 : index
    %3 = vector.load %arg3[%c0_3, %c0_4] : memref<16x1xf32, #tpu.memory_space<vmem>>, vector<16x1xf32>
    %4 = vector.broadcast %3 : vector<16x1xf32> to vector<16x128xf32>
    %5 = arith.addf %2, %4 : vector<16x128xf32>
    %6 = math.tanh %5 : vector<16x128xf32>
    %c0_5 = arith.constant 0 : index
    %c0_6 = arith.constant 0 : index
    %7 = vector.load %arg4[%c0_5, %c0_6] : memref<16x16xf32, #tpu.memory_space<vmem>>, vector<16x16xf32>
    %cst_7 = arith.constant dense<0.000000e+00> : vector<16x128xf32>
    %8 = tpu.matmul %7, %6, %cst_7 {dimension_numbers = #tpu.dot_dimension_numbers<[1], [0], [0], [1], [0, 0, 1, 1], [], []>} : vector<16x16xf32>, vector<16x128xf32>, vector<16x128xf32> -> vector<16x128xf32>
    %c0_8 = arith.constant 0 : index
    %c0_9 = arith.constant 0 : index
    %9 = vector.load %arg5[%c0_8, %c0_9] : memref<16x1xf32, #tpu.memory_space<vmem>>, vector<16x1xf32>
    %10 = vector.broadcast %9 : vector<16x1xf32> to vector<16x128xf32>
    %11 = arith.addf %8, %10 : vector<16x128xf32>
    %12 = math.tanh %11 : vector<16x128xf32>
    %c0_10 = arith.constant 0 : index
    %c0_11 = arith.constant 0 : index
    %13 = vector.load %arg6[%c0_10, %c0_11] : memref<8x16xf32, #tpu.memory_space<vmem>>, vector<8x16xf32>
    %cst_12 = arith.constant dense<0.000000e+00> : vector<8x128xf32>
    %14 = tpu.matmul %13, %12, %cst_12 {dimension_numbers = #tpu.dot_dimension_numbers<[1], [0], [0], [1], [0, 0, 1, 1], [], []>} : vector<8x16xf32>, vector<16x128xf32>, vector<8x128xf32> -> vector<8x128xf32>
    %c0_13 = arith.constant 0 : index
    %c0_14 = arith.constant 0 : index
    %15 = vector.load %arg7[%c0_13, %c0_14] : memref<8x1xf32, #tpu.memory_space<vmem>>, vector<8x1xf32>
    %16 = vector.broadcast %15 : vector<8x1xf32> to vector<8x128xf32>
    %17 = arith.addf %14, %16 : vector<8x128xf32>
    %18 = tpu.iota {dimensions = array<i32: 0>} : vector<8x128xi32>
    %c4_i32 = arith.constant 4 : i32
    %19 = vector.broadcast %c4_i32 : i32 to vector<8x128xi32>
    %20 = arith.cmpi slt, %18, %19 : vector<8x128xi32>
    %cst_15 = arith.constant 0xFF800000 : f32
    %21 = vector.broadcast %cst_15 : f32 to vector<8x128xf32>
    %22 = arith.select %20, %17, %21 : vector<8x128xi1>, vector<8x128xf32>
    %cst_16 = arith.constant dense<0xFF800000> : vector<128xf32>
    %23 = vector.multi_reduction <maximumf>, %22, %cst_16 [0] : vector<8x128xf32> to vector<128xf32>
    %24 = vector.shape_cast %23 : vector<128xf32> to vector<1x128xf32>
    %25 = vector.broadcast %24 : vector<1x128xf32> to vector<8x128xf32>
    %26 = arith.subf %22, %25 : vector<8x128xf32>
    %27 = math.exp %26 : vector<8x128xf32>
    %cst_17 = arith.constant dense<0.000000e+00> : vector<128xf32>
    %28 = vector.multi_reduction <add>, %27, %cst_17 [0] : vector<8x128xf32> to vector<128xf32>
    %29 = vector.shape_cast %28 : vector<128xf32> to vector<1x128xf32>
    %30 = tpu.reciprocal %29 : vector<1x128xf32> -> vector<1x128xf32>
    %31 = vector.broadcast %30 : vector<1x128xf32> to vector<8x128xf32>
    %32 = arith.mulf %27, %31 : vector<8x128xf32>
    %c4_i32_18 = arith.constant 4 : i32
    %33 = vector.broadcast %c4_i32_18 : i32 to vector<8x128xi32>
    %34 = arith.cmpi eq, %18, %33 : vector<8x128xi32>
    %35 = arith.select %34, %17, %32 : vector<8x128xi1>, vector<8x128xf32>
    %c0_19 = arith.constant 0 : index
    %c0_20 = arith.constant 0 : index
    %36 = vector.load %arg8[%c0_19, %c0_20] : memref<8x128xf32, #tpu.memory_space<vmem>>, vector<8x128xf32>
    tpu.vector_store %arg8[%c0_19, %c0_20], %35 {strides = array<i32>} : memref<8x128xf32, #tpu.memory_space<vmem>>, vector<8x128xf32>,
    return
  }
  func.func @transform_0(%arg0: i32) -> (i32, i32) {
    %c0_i32 = arith.constant 0 : i32
    %c0_i32_0 = arith.constant 0 : i32
    return %c0_i32, %arg0 : i32, i32
  }
  func.func @transform_1(%arg0: i32) -> (i32, i32) {
    %c0_i32 = arith.constant 0 : i32
    %c0_i32_0 = arith.constant 0 : i32
    %c0_i32_1 = arith.constant 0 : i32
    return %c0_i32, %c0_i32_0 : i32, i32
  }
  func.func @transform_2(%arg0: i32) -> (i32, i32) {
    %c0_i32 = arith.constant 0 : i32
    %c0_i32_0 = arith.constant 0 : i32
    %c0_i32_1 = arith.constant 0 : i32
    return %c0_i32, %c0_i32_0 : i32, i32
  }
  func.func @transform_3(%arg0: i32) -> (i32, i32) {
    %c0_i32 = arith.constant 0 : i32
    %c0_i32_0 = arith.constant 0 : i32
    %c0_i32_1 = arith.constant 0 : i32
    return %c0_i32, %c0_i32_0 : i32, i32
  }
  func.func @transform_4(%arg0: i32) -> (i32, i32) {
    %c0_i32 = arith.constant 0 : i32
    %c0_i32_0 = arith.constant 0 : i32
    %c0_i32_1 = arith.constant 0 : i32
    return %c0_i32, %c0_i32_0 : i32, i32
  }
  func.func @transform_5(%arg0: i32) -> (i32, i32) {
    %c0_i32 = arith.constant 0 : i32
    %c0_i32_0 = arith.constant 0 : i32
    %c0_i32_1 = arith.constant 0 : i32
    return %c0_i32, %c0_i32_0 : i32, i32
  }
  func.func @transform_6(%arg0: i32) -> (i32, i32) {
    %c0_i32 = arith.constant 0 : i32
    %c0_i32_0 = arith.constant 0 : i32
    %c0_i32_1 = arith.constant 0 : i32
    return %c0_i32, %c0_i32_0 : i32, i32
  }
  func.func @transform_7(%arg0: i32) -> (i32, i32) {
    %c0_i32 = arith.constant 0 : i32
    %c0_i32_0 = arith.constant 0 : i32
    return %c0_i32, %arg0 : i32, i32
  }
}

</mosaic_0001>

<llo_original>
// kernel: _lambda_.1
$region0: #{_lambda_.1}
  #allocation0 [shape = 'u32[]', space=smem, size = 0x4, offset = 0x4, fixed_abs, tag = 'smem constant byte address 0x4 - core index']
  #allocation1 [shape = 'u32[144,128]{1,0:T(1,128)}', space=vmem, size = 0x12000, scoped, tag = 'internal scratch']
  %s0 = inlined_call_operand.vmem [shape: f32[8,128], index: 0, kind: input, shape index: {}]
  %s1 = inlined_call_operand.vmem [shape: f32[16,8], index: 1, kind: input, shape index: {}]
  %s2 = inlined_call_operand.vmem [shape: f32[16,1], index: 2, kind: input, shape index: {}]
  %s3 = inlined_call_operand.vmem [shape: f32[16,16], index: 3, kind: input, shape index: {}]
  %s4 = inlined_call_operand.vmem [shape: f32[16,1], index: 4, kind: input, shape index: {}]
  %s5 = inlined_call_operand.vmem [shape: f32[8,16], index: 5, kind: input, shape index: {}]
  %s6 = inlined_call_operand.vmem [shape: f32[8,1], index: 6, kind: input, shape index: {}]
  %s7 = inlined_call_operand.vmem [shape: f32[8,128], index: 7, kind: output, shape index: {}]
  %s8 = sld [smem:[#allocation0]]
  $region38: #{_lambda_.1} parent=0
    _
  %s10 = ssub.s32 1, %s8
  %s11 = scalar_select 0, %s10, %s8
  // Predicated region
  $region2: #{_lambda_.1} parent=0 // pred_check
    _
  $region3: #{_lambda_.1} parent=0 // pred_check_branch
    %13 = sbr.rel (0) target = $region5
  $region4: #{_lambda_.1} parent=0 // pred_region
    _
  $region5: #{_lambda_.1} parent=0 // pred_fallthru
    _
  // Predicated region
  $region6: #{_lambda_.1} parent=0 // pred_check
    _
  $region7: #{_lambda_.1} parent=0 // pred_check_branch
    %15 = sbr.rel (0) target = $region9
  $region8: #{_lambda_.1} parent=0 // pred_region
    _
  $region9: #{_lambda_.1} parent=0 // pred_fallthru
    _
  // Predicated region
  $region10: #{_lambda_.1} parent=0 // pred_check
    _
  $region11: #{_lambda_.1} parent=0 // pred_check_branch
    %17 = sbr.rel (0) target = $region13
  $region12: #{_lambda_.1} parent=0 // pred_region
    _
  $region13: #{_lambda_.1} parent=0 // pred_fallthru
    _
  // Predicated region
  $region14: #{_lambda_.1} parent=0 // pred_check
    _
  $region15: #{_lambda_.1} parent=0 // pred_check_branch
    %19 = sbr.rel (0) target = $region17
  $region16: #{_lambda_.1} parent=0 // pred_region
    _
  $region17: #{_lambda_.1} parent=0 // pred_fallthru
    _
  // Predicated region
  $region18: #{_lambda_.1} parent=0 // pred_check
    _
  $region19: #{_lambda_.1} parent=0 // pred_check_branch
    %21 = sbr.rel (0) target = $region21
  $region20: #{_lambda_.1} parent=0 // pred_region
    _
  $region21: #{_lambda_.1} parent=0 // pred_fallthru
    _
  // Predicated region
  $region22: #{_lambda_.1} parent=0 // pred_check
    _
  $region23: #{_lambda_.1} parent=0 // pred_check_branch
    %23 = sbr.rel (0) target = $region25
  $region24: #{_lambda_.1} parent=0 // pred_region
    _
  $region25: #{_lambda_.1} parent=0 // pred_fallthru
    _
  // Predicated region
  $region26: #{_lambda_.1} parent=0 // pred_check
    _
  $region27: #{_lambda_.1} parent=0 // pred_check_branch
    %25 = sbr.rel (0) target = $region29
  $region28: #{_lambda_.1} parent=0 // pred_region
    _
  $region29: #{_lambda_.1} parent=0 // pred_fallthru
    _
  %v26 = vld [vmem:[%s0] sm:$0xff]
  %v27 = vld [vmem:[%s1] sm:$0xff]
  %v28 = vld [vmem:[%s1 + $0x8] sm:$0xff]
  %v29 = vld [vmem:[%s2] sm:$0xff]
  %v30 = vld [vmem:[%s2 + $0x8] sm:$0xff]
  %32 = vset.pattern.permute.xlu0 0
  %33 = vperm.xlu0 %32, %v29
  %v34 = vpop.permute.xlu0 %33
  %37 = vset.pattern.permute.xlu0 0
  %38 = vperm.xlu0 %37, %v30
  %v39 = vpop.permute.xlu0 %38
  %vm41 = vcmask 64512
  %v43 = vsel %vm41, %v27, 0
  %v46 = vsel %vm41, %v28, 0
  %48 = vmatprep.subr.mxu0 0.0
  %49 = vmatpush1.msra.mxu0 %v26
  %50 = vmatprep.subr.mxu0 0.0
  %51 = vmatpush1.msra.mxu0 0.0
  %52 = vmatprep.subr.mxu0 0.0
  %53 = vmatpush1.msra.mxu0 0.0
  %54 = vmatprep.subr.mxu0 0.0
  %55 = vmatpush1.msra.mxu0 0.0
  %56 = vmatprep.subr.mxu0 0.0
  %57 = vmatpush1.msra.mxu0 0.0
  %58 = vmatprep.subr.mxu0 0.0
  %59 = vmatpush1.msra.mxu0 0.0
  %60 = vmatprep.subr.mxu0 0.0
  %61 = vmatpush1.msra.mxu0 0.0
  %62 = vmatprep.subr.mxu0 0.0
  %63 = vmatpush1.msra.mxu0 0.0
  %64 = vmatprep.subr.mxu0 0.0
  %65 = vmatpush1.msra.mxu0 0.0
  %66 = vmatprep.subr.mxu0 0.0
  %67 = vmatpush1.msra.mxu0 0.0
  %68 = vmatprep.subr.mxu0 0.0
  %69 = vmatpush1.msra.mxu0 0.0
  %70 = vmatprep.subr.mxu0 0.0
  %71 = vmatpush1.msra.mxu0 0.0
  %72 = vmatprep.subr.mxu0 0.0
  %73 = vmatpush1.msra.mxu0 0.0
  %74 = vmatprep.subr.mxu0 0.0
  %75 = vmatpush1.msra.mxu0 0.0
  %76 = vmatprep.subr.mxu0 0.0
  %77 = vmatpush1.msra.mxu0 0.0
  %78 = vmatprep.subr.mxu0 0.0
  %79 = vmatpush1.msra.mxu0 0.0
  %80 = vmatprep.subr.mxu0 0.0
  %81 = vmatpush1.msra.mxu0 0.0
  %82 = vmatprep.subr.mxu0 0.0
  %83 = vmatpush1.msra.mxu0 0.0
  %84 = vmatprep.subr.mxu0 0.0
  %85 = vmatpush1.msra.mxu0 0.0
  %86 = vmatprep.subr.mxu0 0.0
  %87 = vmatpush1.msra.mxu0 0.0
  %88 = vmatprep.subr.mxu0 0.0
  %89 = vmatpush1.msra.mxu0 0.0
  %90 = vmatprep.subr.mxu0 0.0
  %91 = vmatpush1.msra.mxu0 0.0
  %92 = vmatprep.subr.mxu0 0.0
  %93 = vmatpush1.msra.mxu0 0.0
  %94 = vmatprep.subr.mxu0 0.0
  %95 = vmatpush1.msra.mxu0 0.0
  %96 = vmatprep.subr.mxu0 0.0
  %97 = vmatpush1.msra.mxu0 0.0
  %98 = vmatprep.subr.mxu0 0.0
  %99 = vmatpush1.msra.mxu0 0.0
  %100 = vmatprep.subr.mxu0 0.0
  %101 = vmatpush1.msra.mxu0 0.0
  %102 = vmatprep.subr.mxu0 0.0
  %103 = vmatpush1.msra.mxu0 0.0
  %104 = vmatprep.subr.mxu0 0.0
  %105 = vmatpush1.msra.mxu0 0.0
  %106 = vmatprep.subr.mxu0 0.0
  %107 = vmatpush1.msra.mxu0 0.0
  %108 = vmatprep.subr.mxu0 0.0
  %109 = vmatpush1.msra.mxu0 0.0
  %110 = vmatprep.subr.mxu0 0.0
  %111 = vmatpush1.msra.mxu0 0.0
  %112 = vmatprep.mubr.f32.mxu0 0.0
  %113 = vmatmul.mubr.f32.gmra.mrb[0].mxu0 %v43
  %v114 = vpop.f32.mrb[0].mxu0
  %v115 = vadd.f32 %v34, %v114
  %v116 = vpop.f32.mrb[0].mxu0
  %117 = vmatprep.mubr.f32.mxu0 0.0
  %118 = vmatmul.mubr.f32.gmra.mrb[0].mxu0 %v46
  %v119 = vpop.f32.mrb[0].mxu0
  %v120 = vadd.f32 %v39, %v119
  %v121 = vpop.f32.mrb[0].mxu0
  %122 = vdwg.mxu0
  %v123 = vtanh.pop %v115
  %v124 = vtanh.pop %v120
  %v125 = vld [vmem:[%s3] sm:$0xff]
  %v126 = vld [vmem:[%s3 + $0x8] sm:$0xff]
  %v127 = vld [vmem:[%s4] sm:$0xff]
  %v128 = vld [vmem:[%s4 + $0x8] sm:$0xff]
  %130 = vset.pattern.permute.xlu0 0
  %131 = vperm.xlu0 %130, %v127
  %v132 = vpop.permute.xlu0 %131
  %135 = vset.pattern.permute.xlu0 0
  %136 = vperm.xlu0 %135, %v128
  %v137 = vpop.permute.xlu0 %136
  %vm139 = vcmask 130048
  %v141 = vsel %vm139, %v125, 0
  %v144 = vsel %vm139, %v126, 0
  %146 = vmatprep.subr.mxu0 0.0
  %147 = vmatpush1.msra.mxu0 %v123
  %148 = vmatprep.subr.mxu0 0.0
  %149 = vmatpush1.msra.mxu0 %v124
  %150 = vmatprep.subr.mxu0 0.0
  %151 = vmatpush1.msra.mxu0 0.0
  %152 = vmatprep.subr.mxu0 0.0
  %153 = vmatpush1.msra.mxu0 0.0
  %154 = vmatprep.subr.mxu0 0.0
  %155 = vmatpush1.msra.mxu0 0.0
  %156 = vmatprep.subr.mxu0 0.0
  %157 = vmatpush1.msra.mxu0 0.0
  %158 = vmatprep.subr.mxu0 0.0
  %159 = vmatpush1.msra.mxu0 0.0
  %160 = vmatprep.subr.mxu0 0.0
  %161 = vmatpush1.msra.mxu0 0.0
  %162 = vmatprep.subr.mxu0 0.0
  %163 = vmatpush1.msra.mxu0 0.0
  %164 = vmatprep.subr.mxu0 0.0
  %165 = vmatpush1.msra.mxu0 0.0
  %166 = vmatprep.subr.mxu0 0.0
  %167 = vmatpush1.msra.mxu0 0.0
  %168 = vmatprep.subr.mxu0 0.0
  %169 = vmatpush1.msra.mxu0 0.0
  %170 = vmatprep.subr.mxu0 0.0
  %171 = vmatpush1.msra.mxu0 0.0
  %172 = vmatprep.subr.mxu0 0.0
  %173 = vmatpush1.msra.mxu0 0.0
  %174 = vmatprep.subr.mxu0 0.0
  %175 = vmatpush1.msra.mxu0 0.0
  %176 = vmatprep.subr.mxu0 0.0
  %177 = vmatpush1.msra.mxu0 0.0
  %178 = vmatprep.subr.mxu0 0.0
  %179 = vmatpush1.msra.mxu0 0.0
  %180 = vmatprep.subr.mxu0 0.0
  %181 = vmatpush1.msra.mxu0 0.0
  %182 = vmatprep.subr.mxu0 0.0
  %183 = vmatpush1.msra.mxu0 0.0
  %184 = vmatprep.subr.mxu0 0.0
  %185 = vmatpush1.msra.mxu0 0.0
  %186 = vmatprep.subr.mxu0 0.0
  %187 = vmatpush1.msra.mxu0 0.0
  %188 = vmatprep.subr.mxu0 0.0
  %189 = vmatpush1.msra.mxu0 0.0
  %190 = vmatprep.subr.mxu0 0.0
  %191 = vmatpush1.msra.mxu0 0.0
  %192 = vmatprep.subr.mxu0 0.0
  %193 = vmatpush1.msra.mxu0 0.0
  %194 = vmatprep.subr.mxu0 0.0
  %195 = vmatpush1.msra.mxu0 0.0
  %196 = vmatprep.subr.mxu0 0.0
  %197 = vmatpush1.msra.mxu0 0.0
  %198 = vmatprep.subr.mxu0 0.0
  %199 = vmatpush1.msra.mxu0 0.0
  %200 = vmatprep.subr.mxu0 0.0
  %201 = vmatpush1.msra.mxu0 0.0
  %202 = vmatprep.subr.mxu0 0.0
  %203 = vmatpush1.msra.mxu0 0.0
  %204 = vmatprep.subr.mxu0 0.0
  %205 = vmatpush1.msra.mxu0 0.0
  %206 = vmatprep.subr.mxu0 0.0
  %207 = vmatpush1.msra.mxu0 0.0
  %208 = vmatprep.subr.mxu0 0.0
  %209 = vmatpush1.msra.mxu0 0.0
  %210 = vmatprep.mubr.f32.mxu0 0.0
  %211 = vmatmul.mubr.f32.gmra.mrb[0].mxu0 %v141
  %v212 = vpop.f32.mrb[0].mxu0
  %v213 = vadd.f32 %v132, %v212
  %v214 = vpop.f32.mrb[0].mxu0
  %215 = vmatprep.mubr.f32.mxu0 0.0
  %216 = vmatmul.mubr.f32.gmra.mrb[0].mxu0 %v144
  %v217 = vpop.f32.mrb[0].mxu0
  %v218 = vadd.f32 %v137, %v217
  %v219 = vpop.f32.mrb[0].mxu0
  %220 = vdwg.mxu0
  %v221 = vtanh.pop %v213
  %v222 = vtanh.pop %v218
  %v223 = vld [vmem:[%s5] sm:$0xff]
  %v224 = vld [vmem:[%s6] sm:$0xff]
  %226 = vset.pattern.permute.xlu0 0
  %227 = vperm.xlu0 %226, %v224
  %v228 = vpop.permute.xlu0 %227
  %v231 = vsel %vm139, %v223, 0
  %233 = vmatprep.subr.mxu0 0.0
  %234 = vmatpush1.msra.mxu0 %v221
  %235 = vmatprep.subr.mxu0 0.0
  %236 = vmatpush1.msra.mxu0 %v222
  %237 = vmatprep.subr.mxu0 0.0
  %238 = vmatpush1.msra.mxu0 0.0
  %239 = vmatprep.subr.mxu0 0.0
  %240 = vmatpush1.msra.mxu0 0.0
  %241 = vmatprep.subr.mxu0 0.0
  %242 = vmatpush1.msra.mxu0 0.0
  %243 = vmatprep.subr.mxu0 0.0
  %244 = vmatpush1.msra.mxu0 0.0
  %245 = vmatprep.subr.mxu0 0.0
  %246 = vmatpush1.msra.mxu0 0.0
  %247 = vmatprep.subr.mxu0 0.0
  %248 = vmatpush1.msra.mxu0 0.0
  %249 = vmatprep.subr.mxu0 0.0
  %250 = vmatpush1.msra.mxu0 0.0
  %251 = vmatprep.subr.mxu0 0.0
  %252 = vmatpush1.msra.mxu0 0.0
  %253 = vmatprep.subr.mxu0 0.0
  %254 = vmatpush1.msra.mxu0 0.0
  %255 = vmatprep.subr.mxu0 0.0
  %256 = vmatpush1.msra.mxu0 0.0
  %257 = vmatprep.subr.mxu0 0.0
  %258 = vmatpush1.msra.mxu0 0.0
  %259 = vmatprep.subr.mxu0 0.0
  %260 = vmatpush1.msra.mxu0 0.0
  %261 = vmatprep.subr.mxu0 0.0
  %262 = vmatpush1.msra.mxu0 0.0
  %263 = vmatprep.subr.mxu0 0.0
  %264 = vmatpush1.msra.mxu0 0.0
  %265 = vmatprep.subr.mxu0 0.0
  %266 = vmatpush1.msra.mxu0 0.0
  %267 = vmatprep.subr.mxu0 0.0
  %268 = vmatpush1.msra.mxu0 0.0
  %269 = vmatprep.subr.mxu0 0.0
  %270 = vmatpush1.msra.mxu0 0.0
  %271 = vmatprep.subr.mxu0 0.0
  %272 = vmatpush1.msra.mxu0 0.0
  %273 = vmatprep.subr.mxu0 0.0
  %274 = vmatpush1.msra.mxu0 0.0
  %275 = vmatprep.subr.mxu0 0.0
  %276 = vmatpush1.msra.mxu0 0.0
  %277 = vmatprep.subr.mxu0 0.0
  %278 = vmatpush1.msra.mxu0 0.0
  %279 = vmatprep.subr.mxu0 0.0
  %280 = vmatpush1.msra.mxu0 0.0
  %281 = vmatprep.subr.mxu0 0.0
  %282 = vmatpush1.msra.mxu0 0.0
  %283 = vmatprep.subr.mxu0 0.0
  %284 = vmatpush1.msra.mxu0 0.0
  %285 = vmatprep.subr.mxu0 0.0
  %286 = vmatpush1.msra.mxu0 0.0
  %287 = vmatprep.subr.mxu0 0.0
  %288 = vmatpush1.msra.mxu0 0.0
  %289 = vmatprep.subr.mxu0 0.0
  %290 = vmatpush1.msra.mxu0 0.0
  %291 = vmatprep.subr.mxu0 0.0
  %292 = vmatpush1.msra.mxu0 0.0
  %293 = vmatprep.subr.mxu0 0.0
  %294 = vmatpush1.msra.mxu0 0.0
  %295 = vmatprep.subr.mxu0 0.0
  %296 = vmatpush1.msra.mxu0 0.0
  %297 = vmatprep.mubr.f32.mxu0 0.0
  %298 = vmatmul.mubr.f32.gmra.mrb[0].mxu0 %v231
  %v299 = vpop.f32.mrb[0].mxu0
  %v300 = vadd.f32 %v228, %v299
  %v301 = vpop.f32.mrb[0].mxu0
  %302 = vdwg.mxu0
  %v303 = vlaneseq
  %v304 = vshrl.u32 %v303, 7
  %vm305 = vcmp.lt.s32.totalorder %v304, 4
  %v306 = vsel %vm305, %v300, -inf
  %v307 = vrot.slane %v306, 4
  %v308 = vmax.f32 %v306, %v307
  %v309 = vrot.slane %v308, 2
  %v310 = vmax.f32 %v308, %v309
  %v311 = vrot.slane %v310, 1
  %v312 = vmax.f32 %v310, %v311
  %v313 = vsub.f32 %v306, %v312
  %v314 = vmul.f32 %v313, 1.442695
  %v315 = vpow.pop %v314
  %v316 = vrot.slane %v315, 4
  %v317 = vadd.f32 %v315, %v316
  %v318 = vrot.slane %v317, 2
  %v319 = vadd.f32 %v317, %v318
  %v320 = vrot.slane %v319, 1
  %v321 = vadd.f32 %v319, %v320
  %v322 = vrcp.pop %v321
  %v323 = vmul.f32 %v315, %v322
  %vm324 = vcmp.eq.s32.totalorder %v304, 4
  %v325 = vsel %vm324, %v300, %v323
  %326 = vst [vmem:[%s7] sm:$0xff] %v325
  // Predicated region
  $region30: #{_lambda_.1} parent=0 // pred_check
    _
  $region31: #{_lambda_.1} parent=0 // pred_check_branch
    %328 = sbr.rel (0) target = $region33
  $region32: #{_lambda_.1} parent=0 // pred_region
    _
  $region33: #{_lambda_.1} parent=0 // pred_fallthru
    _
  // Predicated region
  $region34: #{_lambda_.1} parent=0 // pred_check
    _
  $region35: #{_lambda_.1} parent=0 // pred_check_branch
    %330 = sbr.rel (0) target = $region37
  $region36: #{_lambda_.1} parent=0 // pred_region
    _
  $region37: #{_lambda_.1} parent=0 // pred_fallthru
    _

</llo_original>
